<compile_context>
chip_gen: v5e
topology: v5e:2x2
jax: 0.10.0
libtpu: 0.0.40
codegen_flags: <defaults>
</compile_context>

<pallas_src>
import jax
import jax.numpy as jnp
from jax.experimental import pallas as pl
from jax.experimental.pallas import tpu as pltpu


# Layer dims (from the PyTorch module) and lane padding.
K1, N1 = 4, 10     # fc1: in=4, out=10
K2, N2 = 10, 3     # fc2: in=10, out=3
N_PAD = 128        # lane-dense padding for weights / intermediate / output
P_ROWS = K1 + 1 + K2 + 1   # packed param rows: W1(4) b1(1) W2(10) b2(1) = 16


def mlp_kernel(x_ref, p_ref, o_ref):
    B = x_ref.shape[0]
    x = x_ref[...]          # (B, K1) f32
    p = p_ref[...]          # (16, N_PAD) f32 packed [W1; b1; W2; b2], 2 vregs

    # ---- fc1 + bias: VPU broadcast-MAC, fully unrolled over K1 = 4 ----
    h = jnp.broadcast_to(p[K1:K1 + 1, :], (B, N_PAD))          # bias row b1
    for k in range(K1):
        h = h + x[:, k:k + 1] * p[k:k + 1, :]

    # ---- sigmoid: exp (EUP) + approximate reciprocal (EUP) ----
    h = pl.reciprocal(1.0 + jnp.exp(-h), approx=True)
    # padded lanes of h hold sigmoid(0)=0.5 but are never read below (k < K2)

    # ---- fc2 + bias: VPU broadcast-MAC, fully unrolled over K2 = 10 ----
    off = K1 + 1
    y = jnp.broadcast_to(p[off + K2:off + K2 + 1, :], (B, N_PAD))   # bias row b2
    for k in range(K2):
        y = y + h[:, k:k + 1] * p[off + k:off + k + 1, :]

    o_ref[...] = y.astype(o_ref.dtype)                          # lane-dense store


def pack_params(w1, b1, w2, b2):
    """Pack (in,out)-layout weights + biases into one lane-dense (16,128) slab."""
    p = jnp.zeros((P_ROWS, N_PAD), jnp.float32)
    p = p.at[:K1, :N1].set(w1)
    p = p.at[K1, :N1].set(b1.reshape(N1))
    p = p.at[K1 + 1:K1 + 1 + K2, :N2].set(w2)
    p = p.at[K1 + 1 + K2, :N2].set(b2.reshape(N2))
    return p


@jax.jit
def net_forward(x, w1, b1, w2, b2):
    B = x.shape[0]
    params = pack_params(w1, b1, w2, b2)
    out_pad = pl.pallas_call(
        mlp_kernel,
        out_shape=jax.ShapeDtypeStruct((B, N_PAD), jnp.float32),
        # No grid: single invocation, whole arrays resident in VMEM.
        in_specs=[
            pl.BlockSpec(memory_space=pltpu.MemorySpace.VMEM),   # x   (B, 4)
            pl.BlockSpec(memory_space=pltpu.MemorySpace.VMEM),   # params (16, 128)
        ],
        out_specs=pl.BlockSpec(memory_space=pltpu.MemorySpace.VMEM),
    )(x, params)
    return out_pad[:, :N2]


def init_params(key):
    """Deterministic init mimicking nn.Linear default (uniform +/- 1/sqrt(fan_in))."""
    k1, k2, k3, k4 = jax.random.split(key, 4)
    bound1 = 1.0 / jnp.sqrt(K1)
    bound2 = 1.0 / jnp.sqrt(K2)
    # stored as (in, out) — transpose of PyTorch's (out, in) weight layout
    w1 = jax.random.uniform(k1, (K1, N1), jnp.float32, -bound1, bound1)
    b1 = jax.random.uniform(k2, (1, N1), jnp.float32, -bound1, bound1)
    w2 = jax.random.uniform(k3, (K2, N2), jnp.float32, -bound2, bound2)
    b2 = jax.random.uniform(k4, (1, N2), jnp.float32, -bound2, bound2)
    return w1, b1, w2, b2


if __name__ == "__main__":
    key = jax.random.PRNGKey(0)
    kx, kp = jax.random.split(key)

    B = 8  # small batch (one sublane tile)
    x = jax.random.normal(kx, (B, K1), dtype=jnp.float32)
    w1, b1, w2, b2 = init_params(kp)

    out = net_forward(x, w1, b1, w2, b2)
    out = jax.block_until_ready(out)

    # reference check in plain JAX (tolerance loosened for approx reciprocal)
    ref = jax.nn.sigmoid(x @ w1 + b1) @ w2 + b2
    assert out.shape == (B, N2)
    assert jnp.allclose(out, ref, atol=5e-3, rtol=1e-3), (
        f"max abs err {jnp.max(jnp.abs(out - ref))}")

    print("KERNEL_OK")
</pallas_src>

<mosaic_0001>
module attributes {stable_mosaic.version = 11 : i64} {
  func.func @mlp_kernel(%arg0: memref<8x4xf32, #tpu.memory_space<vmem>>, %arg1: memref<16x128xf32, #tpu.memory_space<vmem>>, %arg2: memref<8x128xf32, #tpu.memory_space<vmem>>) attributes {dimension_semantics = [], scalar_prefetch = 0 : i64, scratch_operands = 0 : i64, tpu.core_type = #tpu.core_type<tc>} {
    %c0 = arith.constant 0 : index
    %c0_0 = arith.constant 0 : index
    %0 = vector.load %arg0[%c0, %c0_0] : memref<8x4xf32, #tpu.memory_space<vmem>>, vector<8x4xf32>
    %c0_1 = arith.constant 0 : index
    %c0_2 = arith.constant 0 : index
    %1 = vector.load %arg1[%c0_1, %c0_2] : memref<16x128xf32, #tpu.memory_space<vmem>>, vector<16x128xf32>
    %2 = vector.extract_strided_slice %1 {offsets = [4, 0], sizes = [1, 128], strides = [1, 1]} : vector<16x128xf32> to vector<1x128xf32>
    %3 = vector.shape_cast %2 : vector<1x128xf32> to vector<1x128xf32>
    %4 = vector.broadcast %3 : vector<1x128xf32> to vector<8x128xf32>
    %5 = vector.extract_strided_slice %0 {offsets = [0, 0], sizes = [8, 1], strides = [1, 1]} : vector<8x4xf32> to vector<8x1xf32>
    %6 = vector.extract_strided_slice %1 {offsets = [0, 0], sizes = [1, 128], strides = [1, 1]} : vector<16x128xf32> to vector<1x128xf32>
    %7 = vector.broadcast %5 : vector<8x1xf32> to vector<8x128xf32>
    %8 = vector.broadcast %6 : vector<1x128xf32> to vector<8x128xf32>
    %9 = arith.mulf %7, %8 : vector<8x128xf32>
    %10 = arith.addf %4, %9 : vector<8x128xf32>
    %11 = vector.extract_strided_slice %0 {offsets = [0, 1], sizes = [8, 1], strides = [1, 1]} : vector<8x4xf32> to vector<8x1xf32>
    %12 = vector.extract_strided_slice %1 {offsets = [1, 0], sizes = [1, 128], strides = [1, 1]} : vector<16x128xf32> to vector<1x128xf32>
    %13 = vector.broadcast %11 : vector<8x1xf32> to vector<8x128xf32>
    %14 = vector.broadcast %12 : vector<1x128xf32> to vector<8x128xf32>
    %15 = arith.mulf %13, %14 : vector<8x128xf32>
    %16 = arith.addf %10, %15 : vector<8x128xf32>
    %17 = vector.extract_strided_slice %0 {offsets = [0, 2], sizes = [8, 1], strides = [1, 1]} : vector<8x4xf32> to vector<8x1xf32>
    %18 = vector.extract_strided_slice %1 {offsets = [2, 0], sizes = [1, 128], strides = [1, 1]} : vector<16x128xf32> to vector<1x128xf32>
    %19 = vector.broadcast %17 : vector<8x1xf32> to vector<8x128xf32>
    %20 = vector.broadcast %18 : vector<1x128xf32> to vector<8x128xf32>
    %21 = arith.mulf %19, %20 : vector<8x128xf32>
    %22 = arith.addf %16, %21 : vector<8x128xf32>
    %23 = vector.extract_strided_slice %0 {offsets = [0, 3], sizes = [8, 1], strides = [1, 1]} : vector<8x4xf32> to vector<8x1xf32>
    %24 = vector.extract_strided_slice %1 {offsets = [3, 0], sizes = [1, 128], strides = [1, 1]} : vector<16x128xf32> to vector<1x128xf32>
    %25 = vector.broadcast %23 : vector<8x1xf32> to vector<8x128xf32>
    %26 = vector.broadcast %24 : vector<1x128xf32> to vector<8x128xf32>
    %27 = arith.mulf %25, %26 : vector<8x128xf32>
    %28 = arith.addf %22, %27 : vector<8x128xf32>
    %cst = arith.constant 0.000000e+00 : f32
    %29 = vector.broadcast %cst : f32 to vector<8x128xf32>
    %30 = arith.subf %29, %28 : vector<8x128xf32>
    %31 = math.exp %30 : vector<8x128xf32>
    %cst_3 = arith.constant 1.000000e+00 : f32
    %32 = vector.broadcast %cst_3 : f32 to vector<8x128xf32>
    %33 = arith.addf %32, %31 : vector<8x128xf32>
    %34 = tpu.reciprocal %33 {approx = true} : vector<8x128xf32> -> vector<8x128xf32>
    %35 = vector.extract_strided_slice %1 {offsets = [15, 0], sizes = [1, 128], strides = [1, 1]} : vector<16x128xf32> to vector<1x128xf32>
    %36 = vector.shape_cast %35 : vector<1x128xf32> to vector<1x128xf32>
    %37 = vector.broadcast %36 : vector<1x128xf32> to vector<8x128xf32>
    %38 = vector.extract_strided_slice %34 {offsets = [0, 0], sizes = [8, 1], strides = [1, 1]} : vector<8x128xf32> to vector<8x1xf32>
    %39 = vector.extract_strided_slice %1 {offsets = [5, 0], sizes = [1, 128], strides = [1, 1]} : vector<16x128xf32> to vector<1x128xf32>
    %40 = vector.broadcast %38 : vector<8x1xf32> to vector<8x128xf32>
    %41 = vector.broadcast %39 : vector<1x128xf32> to vector<8x128xf32>
    %42 = arith.mulf %40, %41 : vector<8x128xf32>
    %43 = arith.addf %37, %42 : vector<8x128xf32>
    %44 = vector.extract_strided_slice %34 {offsets = [0, 1], sizes = [8, 1], strides = [1, 1]} : vector<8x128xf32> to vector<8x1xf32>
    %45 = vector.extract_strided_slice %1 {offsets = [6, 0], sizes = [1, 128], strides = [1, 1]} : vector<16x128xf32> to vector<1x128xf32>
    %46 = vector.broadcast %44 : vector<8x1xf32> to vector<8x128xf32>
    %47 = vector.broadcast %45 : vector<1x128xf32> to vector<8x128xf32>
    %48 = arith.mulf %46, %47 : vector<8x128xf32>
    %49 = arith.addf %43, %48 : vector<8x128xf32>
    %50 = vector.extract_strided_slice %34 {offsets = [0, 2], sizes = [8, 1], strides = [1, 1]} : vector<8x128xf32> to vector<8x1xf32>
    %51 = vector.extract_strided_slice %1 {offsets = [7, 0], sizes = [1, 128], strides = [1, 1]} : vector<16x128xf32> to vector<1x128xf32>
    %52 = vector.broadcast %50 : vector<8x1xf32> to vector<8x128xf32>
    %53 = vector.broadcast %51 : vector<1x128xf32> to vector<8x128xf32>
    %54 = arith.mulf %52, %53 : vector<8x128xf32>
    %55 = arith.addf %49, %54 : vector<8x128xf32>
    %56 = vector.extract_strided_slice %34 {offsets = [0, 3], sizes = [8, 1], strides = [1, 1]} : vector<8x128xf32> to vector<8x1xf32>
    %57 = vector.extract_strided_slice %1 {offsets = [8, 0], sizes = [1, 128], strides = [1, 1]} : vector<16x128xf32> to vector<1x128xf32>
    %58 = vector.broadcast %56 : vector<8x1xf32> to vector<8x128xf32>
    %59 = vector.broadcast %57 : vector<1x128xf32> to vector<8x128xf32>
    %60 = arith.mulf %58, %59 : vector<8x128xf32>
    %61 = arith.addf %55, %60 : vector<8x128xf32>
    %62 = vector.extract_strided_slice %34 {offsets = [0, 4], sizes = [8, 1], strides = [1, 1]} : vector<8x128xf32> to vector<8x1xf32>
    %63 = vector.extract_strided_slice %1 {offsets = [9, 0], sizes = [1, 128], strides = [1, 1]} : vector<16x128xf32> to vector<1x128xf32>
    %64 = vector.broadcast %62 : vector<8x1xf32> to vector<8x128xf32>
    %65 = vector.broadcast %63 : vector<1x128xf32> to vector<8x128xf32>
    %66 = arith.mulf %64, %65 : vector<8x128xf32>
    %67 = arith.addf %61, %66 : vector<8x128xf32>
    %68 = vector.extract_strided_slice %34 {offsets = [0, 5], sizes = [8, 1], strides = [1, 1]} : vector<8x128xf32> to vector<8x1xf32>
    %69 = vector.extract_strided_slice %1 {offsets = [10, 0], sizes = [1, 128], strides = [1, 1]} : vector<16x128xf32> to vector<1x128xf32>
    %70 = vector.broadcast %68 : vector<8x1xf32> to vector<8x128xf32>
    %71 = vector.broadcast %69 : vector<1x128xf32> to vector<8x128xf32>
    %72 = arith.mulf %70, %71 : vector<8x128xf32>
    %73 = arith.addf %67, %72 : vector<8x128xf32>
    %74 = vector.extract_strided_slice %34 {offsets = [0, 6], sizes = [8, 1], strides = [1, 1]} : vector<8x128xf32> to vector<8x1xf32>
    %75 = vector.extract_strided_slice %1 {offsets = [11, 0], sizes = [1, 128], strides = [1, 1]} : vector<16x128xf32> to vector<1x128xf32>
    %76 = vector.broadcast %74 : vector<8x1xf32> to vector<8x128xf32>
    %77 = vector.broadcast %75 : vector<1x128xf32> to vector<8x128xf32>
    %78 = arith.mulf %76, %77 : vector<8x128xf32>
    %79 = arith.addf %73, %78 : vector<8x128xf32>
    %80 = vector.extract_strided_slice %34 {offsets = [0, 7], sizes = [8, 1], strides = [1, 1]} : vector<8x128xf32> to vector<8x1xf32>
    %81 = vector.extract_strided_slice %1 {offsets = [12, 0], sizes = [1, 128], strides = [1, 1]} : vector<16x128xf32> to vector<1x128xf32>
    %82 = vector.broadcast %80 : vector<8x1xf32> to vector<8x128xf32>
    %83 = vector.broadcast %81 : vector<1x128xf32> to vector<8x128xf32>
    %84 = arith.mulf %82, %83 : vector<8x128xf32>
    %85 = arith.addf %79, %84 : vector<8x128xf32>
    %86 = vector.extract_strided_slice %34 {offsets = [0, 8], sizes = [8, 1], strides = [1, 1]} : vector<8x128xf32> to vector<8x1xf32>
    %87 = vector.extract_strided_slice %1 {offsets = [13, 0], sizes = [1, 128], strides = [1, 1]} : vector<16x128xf32> to vector<1x128xf32>
    %88 = vector.broadcast %86 : vector<8x1xf32> to vector<8x128xf32>
    %89 = vector.broadcast %87 : vector<1x128xf32> to vector<8x128xf32>
    %90 = arith.mulf %88, %89 : vector<8x128xf32>
    %91 = arith.addf %85, %90 : vector<8x128xf32>
    %92 = vector.extract_strided_slice %34 {offsets = [0, 9], sizes = [8, 1], strides = [1, 1]} : vector<8x128xf32> to vector<8x1xf32>
    %93 = vector.extract_strided_slice %1 {offsets = [14, 0], sizes = [1, 128], strides = [1, 1]} : vector<16x128xf32> to vector<1x128xf32>
    %94 = vector.broadcast %92 : vector<8x1xf32> to vector<8x128xf32>
    %95 = vector.broadcast %93 : vector<1x128xf32> to vector<8x128xf32>
    %96 = arith.mulf %94, %95 : vector<8x128xf32>
    %97 = arith.addf %91, %96 : vector<8x128xf32>
    %c0_4 = arith.constant 0 : index
    %c0_5 = arith.constant 0 : index
    %98 = vector.load %arg2[%c0_4, %c0_5] : memref<8x128xf32, #tpu.memory_space<vmem>>, vector<8x128xf32>
    tpu.vector_store %arg2[%c0_4, %c0_5], %97 {strides = array<i32>} : memref<8x128xf32, #tpu.memory_space<vmem>>, vector<8x128xf32>,
    return
  }
}

</mosaic_0001>

<llo_original>
// kernel: net_forward.1
$region0: #{net_forward.1}
  #allocation0 [shape = 'u32[]', space=smem, size = 0x4, offset = 0x4, fixed_abs, tag = 'smem constant byte address 0x4 - core index']
  #allocation1 [shape = 'u32[72,128]{1,0:T(1,128)}', space=vmem, size = 0x9000, scoped, tag = 'internal scratch']
  %s0 = inlined_call_operand.vmem [shape: f32[8,4], index: 0, kind: input, shape index: {}]
  %s1 = inlined_call_operand.vmem [shape: f32[16,128], index: 1, kind: input, shape index: {}]
  %s2 = inlined_call_operand.vmem [shape: f32[8,128], index: 2, kind: output, shape index: {}]
  %s3 = sld [smem:[#allocation0]]
  $region18: #{net_forward.1} parent=0
    _
  %s5 = ssub.s32 1, %s3
  %s6 = scalar_select 0, %s5, %s3
  // Predicated region
  $region2: #{net_forward.1} parent=0 // pred_check
    _
  $region3: #{net_forward.1} parent=0 // pred_check_branch
    %8 = sbr.rel (0) target = $region5
  $region4: #{net_forward.1} parent=0 // pred_region
    _
  $region5: #{net_forward.1} parent=0 // pred_fallthru
    _
  // Predicated region
  $region6: #{net_forward.1} parent=0 // pred_check
    _
  $region7: #{net_forward.1} parent=0 // pred_check_branch
    %10 = sbr.rel (0) target = $region9
  $region8: #{net_forward.1} parent=0 // pred_region
    _
  $region9: #{net_forward.1} parent=0 // pred_fallthru
    _
  %v11 = vld [vmem:[%s0] sm:$0xff]
  %v12 = vld [vmem:[%s1] sm:$0xff]
  %v13 = vld [vmem:[%s1 + $0x8] sm:$0xff]
  %v14 = vperm.slane %v12, 4
  %16 = vset.pattern.permute.xlu0 0
  %17 = vperm.xlu0 %16, %v11
  %v18 = vpop.permute.xlu0 %17
  %v20 = vperm.slane %v12, 0
  %v21 = vmul.f32 %v18, %v20
  %v22 = vadd.f32 %v14, %v21
  %23 = vset.pattern.permute.xlu0 1
  %24 = vperm.xlu0 %23, %v11
  %v25 = vpop.permute.xlu0 %24
  %v27 = vperm.slane %v12, 1
  %v28 = vmul.f32 %v25, %v27
  %v29 = vadd.f32 %v22, %v28
  %30 = vset.pattern.permute.xlu0 2
  %31 = vperm.xlu0 %30, %v11
  %v32 = vpop.permute.xlu0 %31
  %v34 = vperm.slane %v12, 2
  %v35 = vmul.f32 %v32, %v34
  %v36 = vadd.f32 %v29, %v35
  %37 = vset.pattern.permute.xlu0 3
  %38 = vperm.xlu0 %37, %v11
  %v39 = vpop.permute.xlu0 %38
  %v41 = vperm.slane %v12, 3
  %v42 = vmul.f32 %v39, %v41
  %v43 = vadd.f32 %v36, %v42
  %v44 = vsub.f32 0.0, %v43
  %v45 = vmul.f32 %v44, 1.442695
  %v46 = vpow.pop %v45
  %v47 = vadd.f32 %v46, 1.0
  %v48 = vrcp.pop %v47
  %v49 = vperm.slane %v13, 7
  %51 = vset.pattern.permute.xlu0 0
  %52 = vperm.xlu0 %51, %v48
  %v53 = vpop.permute.xlu0 %52
  %v55 = vperm.slane %v12, 5
  %v56 = vmul.f32 %v53, %v55
  %v57 = vadd.f32 %v49, %v56
  %58 = vset.pattern.permute.xlu0 1
  %59 = vperm.xlu0 %58, %v48
  %v60 = vpop.permute.xlu0 %59
  %v62 = vperm.slane %v12, 6
  %v63 = vmul.f32 %v60, %v62
  %v64 = vadd.f32 %v57, %v63
  %65 = vset.pattern.permute.xlu0 2
  %66 = vperm.xlu0 %65, %v48
  %v67 = vpop.permute.xlu0 %66
  %v69 = vperm.slane %v12, 7
  %v70 = vmul.f32 %v67, %v69
  %v71 = vadd.f32 %v64, %v70
  %72 = vset.pattern.permute.xlu0 3
  %73 = vperm.xlu0 %72, %v48
  %v74 = vpop.permute.xlu0 %73
  %v76 = vperm.slane %v13, 0
  %v77 = vmul.f32 %v74, %v76
  %v78 = vadd.f32 %v71, %v77
  %79 = vset.pattern.permute.xlu0 4
  %80 = vperm.xlu0 %79, %v48
  %v81 = vpop.permute.xlu0 %80
  %v83 = vperm.slane %v13, 1
  %v84 = vmul.f32 %v81, %v83
  %v85 = vadd.f32 %v78, %v84
  %86 = vset.pattern.permute.xlu0 5
  %87 = vperm.xlu0 %86, %v48
  %v88 = vpop.permute.xlu0 %87
  %v90 = vperm.slane %v13, 2
  %v91 = vmul.f32 %v88, %v90
  %v92 = vadd.f32 %v85, %v91
  %93 = vset.pattern.permute.xlu0 6
  %94 = vperm.xlu0 %93, %v48
  %v95 = vpop.permute.xlu0 %94
  %v97 = vperm.slane %v13, 3
  %v98 = vmul.f32 %v95, %v97
  %v99 = vadd.f32 %v92, %v98
  %100 = vset.pattern.permute.xlu0 7
  %101 = vperm.xlu0 %100, %v48
  %v102 = vpop.permute.xlu0 %101
  %v104 = vperm.slane %v13, 4
  %v105 = vmul.f32 %v102, %v104
  %v106 = vadd.f32 %v99, %v105
  %107 = vset.pattern.permute.xlu0 8
  %108 = vperm.xlu0 %107, %v48
  %v109 = vpop.permute.xlu0 %108
  %v111 = vperm.slane %v13, 5
  %v112 = vmul.f32 %v109, %v111
  %v113 = vadd.f32 %v106, %v112
  %114 = vset.pattern.permute.xlu0 9
  %115 = vperm.xlu0 %114, %v48
  %v116 = vpop.permute.xlu0 %115
  %v118 = vperm.slane %v13, 6
  %v119 = vmul.f32 %v116, %v118
  %v120 = vadd.f32 %v113, %v119
  %121 = vst [vmem:[%s2] sm:$0xff] %v120
  // Predicated region
  $region10: #{net_forward.1} parent=0 // pred_check
    _
  $region11: #{net_forward.1} parent=0 // pred_check_branch
    %123 = sbr.rel (0) target = $region13
  $region12: #{net_forward.1} parent=0 // pred_region
    _
  $region13: #{net_forward.1} parent=0 // pred_fallthru
    _
  // Predicated region
  $region14: #{net_forward.1} parent=0 // pred_check
    _
  $region15: #{net_forward.1} parent=0 // pred_check_branch
    %125 = sbr.rel (0) target = $region17
  $region16: #{net_forward.1} parent=0 // pred_region
    _
  $region17: #{net_forward.1} parent=0 // pred_fallthru
    _

</llo_original>
